<compile_context>
chip_gen: v7x
topology: tpu7x:2x2x1
jax: 0.10.0
libtpu: 0.0.40
codegen_flags: <defaults>
</compile_context>

<pallas_src>
import functools

import jax
import jax.numpy as jnp
from jax.experimental import pallas as pl
from jax.experimental.pallas import tpu as pltpu

H1 = 400   # obs_net hidden width
H2 = 300   # out_net hidden width


def _round_up(n, m):
    return ((n + m - 1) // m) * m


def _critic_kernel(xa_ref, w1_ref, w2o_ref, w2a_ref, w3_ref, b_ref, out_ref):
    """One batch tile of the full forward MLP (all lane-dense, padded widths).

    xa_ref  : (TM, obs+act)   bf16  packed [x | a]
    w1_ref  : (obs+act, H1P)  bf16  (zero rows for `a`, zero cols 400..H1P)
    w2o_ref : (H1P, H2P)      bf16  (zero rows 400..H1P, zero cols 300..H2P)
    w2a_ref : (obs+act, H2P)  bf16  (zero rows for `x`, zero cols 300..H2P)
    w3_ref  : (H2P, NP)       bf16  (zero rows 300..H2P, atoms padded to NP)
    b_ref   : (3, BW)         f32   row0=b1, row1=b2, row2=b3 (zero padded)
    out_ref : (TM, NP)        f32
    """
    h1p = w1_ref.shape[1]
    h2p = w2o_ref.shape[1]
    npad = w3_ref.shape[1]
    wdt = w1_ref.dtype

    xa = xa_ref[...].astype(wdt)

    b1 = b_ref[0:1, :h1p]       # lane-aligned (multiples of 128)
    b2 = b_ref[1:2, :h2p]
    b3 = b_ref[2:3, :npad]

    # obs_net: Linear + ReLU  (f32 accumulation, f32 elementwise)
    h1 = jnp.dot(xa, w1_ref[...], preferred_element_type=jnp.float32) + b1
    h1 = jnp.maximum(h1, 0.0)

    # out_net layer 1: cat([h1, a]) @ W2  ==  h1 @ W2_obs + [x|a] @ W2_act_ext
    h2 = (jnp.dot(h1.astype(wdt), w2o_ref[...], preferred_element_type=jnp.float32)
          + jnp.dot(xa, w2a_ref[...], preferred_element_type=jnp.float32)
          + b2)
    h2 = jnp.maximum(h2, 0.0)

    # out_net layer 2: Linear(300, n_atoms)  (lane-dense padded output)
    out_ref[...] = (jnp.dot(h2.astype(wdt), w3_ref[...],
                            preferred_element_type=jnp.float32)
                    + b3).astype(out_ref.dtype)


@functools.partial(jax.jit, static_argnames=("n_atoms", "block_b"))
def d4pg_critic_forward(x, a, packed_params, *, n_atoms, block_b=128):
    """Pallas-backed forward: returns (B, n_atoms) logits (pre-softmax distribution)."""
    w1e, w2o, w2ae, w3p, bias = packed_params
    B = x.shape[0]
    wdt = w1e.dtype
    NP = w3p.shape[1]

    # Batch tile: 128 for real batches, small multiple of 16 for tiny ones
    # (16 keeps bf16 sublane packing happy).
    tm = block_b if B >= block_b else max(16, _round_up(B, 16))
    n_tiles = pl.cdiv(B, tm)
    Bp = n_tiles * tm

    # Pack [x | a] once, cast to the MXU/weight dtype in the wrapper (halves the
    # HBM bytes of the only per-tile streamed input); pad batch rows with zeros.
    xa = jnp.concatenate([x, a], axis=1).astype(wdt)
    xa = jnp.pad(xa, ((0, Bp - B), (0, 0)))
    xa_w = xa.shape[1]

    const = lambda i: (0, 0)   # weights/biases: same block every step -> VMEM resident

    flops = 2 * Bp * (w1e.shape[0] * w1e.shape[1]
                      + w2o.shape[0] * w2o.shape[1]
                      + w2ae.shape[0] * w2ae.shape[1]
                      + w3p.shape[0] * w3p.shape[1])
    bytes_accessed = (xa.size * xa.dtype.itemsize
                      + sum(w.size * w.dtype.itemsize
                            for w in (w1e, w2o, w2ae, w3p, bias))
                      + Bp * NP * 4)

    out = pl.pallas_call(
        _critic_kernel,
        out_shape=jax.ShapeDtypeStruct((Bp, NP), jnp.float32),
        grid=(n_tiles,),
        in_specs=[
            pl.BlockSpec((tm, xa_w), lambda i: (i, 0)),   # per-tile activations
            pl.BlockSpec(w1e.shape, const),
            pl.BlockSpec(w2o.shape, const),
            pl.BlockSpec(w2ae.shape, const),
            pl.BlockSpec(w3p.shape, const),
            pl.BlockSpec(bias.shape, const),
        ],
        out_specs=pl.BlockSpec((tm, NP), lambda i: (i, 0)),
        compiler_params=pltpu.CompilerParams(
            dimension_semantics=("parallel",)),
        cost_estimate=pl.CostEstimate(flops=flops, transcendentals=0,
                                      bytes_accessed=bytes_accessed),
    )(xa, w1e, w2o, w2ae, w3p, bias)

    return out[:B, :n_atoms]


def init_params(key, obs_size, act_size, n_atoms):
    """PyTorch-Linear-like parameters (f32 masters), weights stored (in, out)."""
    ks = jax.random.split(key, 6)

    def lin(kw, kb, fan_in, fan_out):
        bound = 1.0 / (fan_in ** 0.5)
        w = jax.random.uniform(kw, (fan_in, fan_out), jnp.float32, -bound, bound)
        b = jax.random.uniform(kb, (fan_out,), jnp.float32, -bound, bound)
        return w, b

    w1, b1 = lin(ks[0], ks[1], obs_size, H1)
    w2, b2 = lin(ks[2], ks[3], H1 + act_size, H2)
    w3, b3 = lin(ks[4], ks[5], H2, n_atoms)
    return {"w1": w1, "b1": b1, "w2": w2, "b2": b2, "w3": w3, "b3": b3}


def pack_params(p, obs_size, act_size, n_atoms, weight_dtype=jnp.bfloat16):
    """Repack PyTorch-style params into the kernel layout (lane-dense padded).

    - layer-1 weight extended with zero rows for `a` (so [x|a] @ w1e == x @ w1)
    - layer-2 weight split: obs part (H1P, H2P) and an extended action part with
      zero rows for `x` (so [x|a] @ w2ae == a @ w2_act)
    - every output width zero-padded to a multiple of 128 (400->512, 300->384,
      n_atoms->128) so all intermediates / stores are full-lane
    - biases packed into a single (3, BW) f32 buffer
    """
    xa_w = obs_size + act_size
    H1P = _round_up(H1, 128)
    H2P = _round_up(H2, 128)
    NP = _round_up(max(n_atoms, 128), 128)
    BW = max(H1P, H2P, NP)

    w1e = (jnp.zeros((xa_w, H1P), jnp.float32)
           .at[:obs_size, :H1].set(p["w1"]).astype(weight_dtype))
    w2o = (jnp.zeros((H1P, H2P), jnp.float32)
           .at[:H1, :H2].set(p["w2"][:H1]).astype(weight_dtype))
    w2ae = (jnp.zeros((xa_w, H2P), jnp.float32)
            .at[obs_size:, :H2].set(p["w2"][H1:]).astype(weight_dtype))
    w3p = (jnp.zeros((H2P, NP), jnp.float32)
           .at[:H2, :n_atoms].set(p["w3"]).astype(weight_dtype))

    bias = jnp.zeros((3, BW), jnp.float32)
    bias = bias.at[0, :H1].set(p["b1"])
    bias = bias.at[1, :H2].set(p["b2"])
    bias = bias.at[2, :n_atoms].set(p["b3"])
    return (w1e, w2o, w2ae, w3p, bias)


def reference_forward(x, a, params):
    """Pure-JAX f32 reference of the PyTorch forward."""
    h1 = jax.nn.relu(x @ params["w1"] + params["b1"])
    h2 = jax.nn.relu(jnp.concatenate([h1, a], axis=1) @ params["w2"] + params["b2"])
    return h2 @ params["w3"] + params["b3"]


def reference_forward_kernel_numerics(x, a, packed_params, n_atoms):
    """Reference mirroring the kernel's dtype/padding strategy (bf16 MXU, f32 accum)."""
    w1e, w2o, w2ae, w3p, bias = packed_params
    wdt = w1e.dtype
    h1p, h2p, npad = w1e.shape[1], w2o.shape[1], w3p.shape[1]
    xa = jnp.concatenate([x, a], axis=1).astype(wdt)
    h1 = jnp.maximum(
        jnp.dot(xa, w1e, preferred_element_type=jnp.float32) + bias[0, :h1p], 0.0)
    h2 = jnp.maximum(
        jnp.dot(h1.astype(wdt), w2o, preferred_element_type=jnp.float32)
        + jnp.dot(xa, w2ae, preferred_element_type=jnp.float32) + bias[1, :h2p], 0.0)
    out = jnp.dot(h2.astype(wdt), w3p, preferred_element_type=jnp.float32) + bias[2, :npad]
    return out[:, :n_atoms]


def distr_to_q(distr, supports):
    """Glue (not the hot path): expected Q from the atom distribution."""
    # TODO(synk): left as plain JAX; tiny softmax+reduce is not worth a kernel.
    weights = jax.nn.softmax(distr, axis=1) * supports
    return weights.sum(axis=1)[:, None]


if __name__ == "__main__":
    # Small shapes consistent with BipedalWalker-style D4PG.
    obs_size, act_size = 24, 4
    n_atoms, v_min, v_max = 51, -10.0, 10.0

    key = jax.random.PRNGKey(0)
    k_p, k_small, k_big = jax.random.split(key, 3)

    params = init_params(k_p, obs_size, act_size, n_atoms)
    packed = pack_params(params, obs_size, act_size, n_atoms)        # bf16 weights
    supports = jnp.linspace(v_min, v_max, n_atoms)                   # register_buffer('supports', ...)

    logits = None
    last_batch = 0
    for batch, k in ((2, k_small), (300, k_big)):   # tiny batch + multi-tile batch
        kx, ka = jax.random.split(k)
        x = jax.random.normal(kx, (batch, obs_size), jnp.float32)
        a = jax.random.uniform(ka, (batch, act_size), jnp.float32, -1.0, 1.0)

        logits = jax.block_until_ready(
            d4pg_critic_forward(x, a, packed, n_atoms=n_atoms))
        last_batch = batch

        # Tight check vs a reference using identical numerics (structure/layout bugs).
        ref_tight = reference_forward_kernel_numerics(x, a, packed, n_atoms)
        if not jnp.allclose(logits, ref_tight, atol=1e-3, rtol=1e-3):
            raise AssertionError(f"batch={batch}: mismatch vs kernel-numerics reference")

        # Loose check vs the pure f32 PyTorch-equivalent forward (bf16 weight storage).
        ref_f32 = reference_forward(x, a, params)
        if not jnp.allclose(logits, ref_f32, atol=3e-2, rtol=3e-2):
            raise AssertionError(f"batch={batch}: mismatch vs f32 reference")

    # Exercise the (non-kernel) distr_to_q helper as well.
    q = jax.block_until_ready(distr_to_q(logits, supports))
    assert q.shape == (last_batch, 1)

    print("KERNEL_OK")
</pallas_src>

<mosaic_0001>
module attributes {stable_mosaic.version = 11 : i64} {
  func.func @_critic_kernel(%arg0: i32, %arg1: memref<16x28xbf16, #tpu.memory_space<vmem>>, %arg2: memref<28x512xbf16, #tpu.memory_space<vmem>>, %arg3: memref<512x384xbf16, #tpu.memory_space<vmem>>, %arg4: memref<28x384xbf16, #tpu.memory_space<vmem>>, %arg5: memref<384x128xbf16, #tpu.memory_space<vmem>>, %arg6: memref<3x512xf32, #tpu.memory_space<vmem>>, %arg7: memref<16x128xf32, #tpu.memory_space<vmem>>) attributes {dimension_semantics = [#tpu.dimension_semantics<parallel>], iteration_bounds = array<i64: 1>, scalar_prefetch = 0 : i64, scratch_operands = 0 : i64, tpu.core_type = #tpu.core_type<tc>, window_params = [{transform_indices = @transform_0, window_bounds = array<i64: 16, 28>}, {pipeline_mode = #tpu.pipeline_mode<synchronous>, transform_indices = @transform_1, window_bounds = array<i64: 28, 512>}, {pipeline_mode = #tpu.pipeline_mode<synchronous>, transform_indices = @transform_2, window_bounds = array<i64: 512, 384>}, {pipeline_mode = #tpu.pipeline_mode<synchronous>, transform_indices = @transform_3, window_bounds = array<i64: 28, 384>}, {pipeline_mode = #tpu.pipeline_mode<synchronous>, transform_indices = @transform_4, window_bounds = array<i64: 384, 128>}, {pipeline_mode = #tpu.pipeline_mode<synchronous>, transform_indices = @transform_5, window_bounds = array<i64: 3, 512>}, {transform_indices = @transform_6, window_bounds = array<i64: 16, 128>}]} {
    %c0 = arith.constant 0 : index
    %c0_0 = arith.constant 0 : index
    %0 = vector.load %arg1[%c0, %c0_0] : memref<16x28xbf16, #tpu.memory_space<vmem>>, vector<16x28xbf16>
    %c0_1 = arith.constant 0 : index
    %c0_2 = arith.constant 0 : index
    %1 = vector.load %arg6[%c0_1, %c0_2] : memref<3x512xf32, #tpu.memory_space<vmem>>, vector<1x512xf32>
    %c1 = arith.constant 1 : index
    %c0_3 = arith.constant 0 : index
    %2 = vector.load %arg6[%c1, %c0_3] : memref<3x512xf32, #tpu.memory_space<vmem>>, vector<1x384xf32>
    %c2 = arith.constant 2 : index
    %c0_4 = arith.constant 0 : index
    %3 = vector.load %arg6[%c2, %c0_4] : memref<3x512xf32, #tpu.memory_space<vmem>>, vector<1x128xf32>
    %c0_5 = arith.constant 0 : index
    %c0_6 = arith.constant 0 : index
    %4 = vector.load %arg2[%c0_5, %c0_6] : memref<28x512xbf16, #tpu.memory_space<vmem>>, vector<28x512xbf16>
    %cst = arith.constant dense<0.000000e+00> : vector<16x512xf32>
    %5 = tpu.matmul %0, %4, %cst {dimension_numbers = #tpu.dot_dimension_numbers<[1], [0], [0], [1], [0, 0, 1, 1], [], []>} : vector<16x28xbf16>, vector<28x512xbf16>, vector<16x512xf32> -> vector<16x512xf32>
    %6 = vector.broadcast %1 : vector<1x512xf32> to vector<16x512xf32>
    %7 = arith.addf %5, %6 : vector<16x512xf32>
    %cst_7 = arith.constant 0.000000e+00 : f32
    %8 = vector.broadcast %cst_7 : f32 to vector<16x512xf32>
    %9 = arith.maximumf %7, %8 : vector<16x512xf32>
    %10 = arith.truncf %9 : vector<16x512xf32> to vector<16x512xbf16>
    %c0_8 = arith.constant 0 : index
    %c0_9 = arith.constant 0 : index
    %11 = vector.load %arg3[%c0_8, %c0_9] : memref<512x384xbf16, #tpu.memory_space<vmem>>, vector<512x384xbf16>
    %cst_10 = arith.constant dense<0.000000e+00> : vector<16x384xf32>
    %12 = tpu.matmul %10, %11, %cst_10 {dimension_numbers = #tpu.dot_dimension_numbers<[1], [0], [0], [1], [0, 0, 1, 1], [], []>} : vector<16x512xbf16>, vector<512x384xbf16>, vector<16x384xf32> -> vector<16x384xf32>
    %c0_11 = arith.constant 0 : index
    %c0_12 = arith.constant 0 : index
    %13 = vector.load %arg4[%c0_11, %c0_12] : memref<28x384xbf16, #tpu.memory_space<vmem>>, vector<28x384xbf16>
    %cst_13 = arith.constant dense<0.000000e+00> : vector<16x384xf32>
    %14 = tpu.matmul %0, %13, %cst_13 {dimension_numbers = #tpu.dot_dimension_numbers<[1], [0], [0], [1], [0, 0, 1, 1], [], []>} : vector<16x28xbf16>, vector<28x384xbf16>, vector<16x384xf32> -> vector<16x384xf32>
    %15 = arith.addf %12, %14 : vector<16x384xf32>
    %16 = vector.broadcast %2 : vector<1x384xf32> to vector<16x384xf32>
    %17 = arith.addf %15, %16 : vector<16x384xf32>
    %cst_14 = arith.constant 0.000000e+00 : f32
    %18 = vector.broadcast %cst_14 : f32 to vector<16x384xf32>
    %19 = arith.maximumf %17, %18 : vector<16x384xf32>
    %20 = arith.truncf %19 : vector<16x384xf32> to vector<16x384xbf16>
    %c0_15 = arith.constant 0 : index
    %c0_16 = arith.constant 0 : index
    %21 = vector.load %arg5[%c0_15, %c0_16] : memref<384x128xbf16, #tpu.memory_space<vmem>>, vector<384x128xbf16>
    %cst_17 = arith.constant dense<0.000000e+00> : vector<16x128xf32>
    %22 = tpu.matmul %20, %21, %cst_17 {dimension_numbers = #tpu.dot_dimension_numbers<[1], [0], [0], [1], [0, 0, 1, 1], [], []>} : vector<16x384xbf16>, vector<384x128xbf16>, vector<16x128xf32> -> vector<16x128xf32>
    %23 = vector.broadcast %3 : vector<1x128xf32> to vector<16x128xf32>
    %24 = arith.addf %22, %23 : vector<16x128xf32>
    %c0_18 = arith.constant 0 : index
    %c0_19 = arith.constant 0 : index
    %25 = vector.load %arg7[%c0_18, %c0_19] : memref<16x128xf32, #tpu.memory_space<vmem>>, vector<16x128xf32>
    tpu.vector_store %arg7[%c0_18, %c0_19], %24 {strides = array<i32>} : memref<16x128xf32, #tpu.memory_space<vmem>>, vector<16x128xf32>,
    return
  }
  func.func @transform_0(%arg0: i32) -> (i32, i32) {
    %c0_i32 = arith.constant 0 : i32
    %c0_i32_0 = arith.constant 0 : i32
    return %arg0, %c0_i32 : i32, i32
  }
  func.func @transform_1(%arg0: i32) -> (i32, i32) {
    %c0_i32 = arith.constant 0 : i32
    %c0_i32_0 = arith.constant 0 : i32
    %c0_i32_1 = arith.constant 0 : i32
    return %c0_i32, %c0_i32_0 : i32, i32
  }
  func.func @transform_2(%arg0: i32) -> (i32, i32) {
    %c0_i32 = arith.constant 0 : i32
    %c0_i32_0 = arith.constant 0 : i32
    %c0_i32_1 = arith.constant 0 : i32
    return %c0_i32, %c0_i32_0 : i32, i32
  }
  func.func @transform_3(%arg0: i32) -> (i32, i32) {
    %c0_i32 = arith.constant 0 : i32
    %c0_i32_0 = arith.constant 0 : i32
    %c0_i32_1 = arith.constant 0 : i32
    return %c0_i32, %c0_i32_0 : i32, i32
  }
  func.func @transform_4(%arg0: i32) -> (i32, i32) {
    %c0_i32 = arith.constant 0 : i32
    %c0_i32_0 = arith.constant 0 : i32
    %c0_i32_1 = arith.constant 0 : i32
    return %c0_i32, %c0_i32_0 : i32, i32
  }
  func.func @transform_5(%arg0: i32) -> (i32, i32) {
    %c0_i32 = arith.constant 0 : i32
    %c0_i32_0 = arith.constant 0 : i32
    %c0_i32_1 = arith.constant 0 : i32
    return %c0_i32, %c0_i32_0 : i32, i32
  }
  func.func @transform_6(%arg0: i32) -> (i32, i32) {
    %c0_i32 = arith.constant 0 : i32
    %c0_i32_0 = arith.constant 0 : i32
    return %arg0, %c0_i32 : i32, i32
  }
}

</mosaic_0001>

<llo_original>
// kernel: d4pg_critic_forward.1
$region0: #{d4pg_critic_forward.1}
  #allocation0 [shape = 'u32[]', space=smem, size = 0x4, offset = 0x4, fixed_abs, tag = 'smem constant byte address 0x4 - core index']
  #allocation1 [shape = 'u32[144,128]{1,0:T(1,128)}', space=vmem, size = 0x12000, scoped, tag = 'internal scratch']
  %s0 = inlined_call_operand.vmem [shape: bf16[16,28], index: 0, kind: input, shape index: {}]
  %s1 = inlined_call_operand.hbm [shape: bf16[28,512], index: 1, kind: input, shape index: {}]
  %s2 = inlined_call_operand.hbm [shape: bf16[512,384], index: 2, kind: input, shape index: {}]
  %s3 = inlined_call_operand.hbm [shape: bf16[28,384], index: 3, kind: input, shape index: {}]
  %s4 = inlined_call_operand.hbm [shape: bf16[384,128], index: 4, kind: input, shape index: {}]
  %s5 = inlined_call_operand.vmem [shape: f32[3,512], index: 5, kind: input, shape index: {}]
  %s6 = inlined_call_operand.vmem [shape: f32[16,128], index: 6, kind: output, shape index: {}]
  %s7 = sld [smem:[#allocation0]]
  $region50: #{d4pg_critic_forward.1} parent=0
    _
  %s9 = ssub.s32 1, %s7
  %s10 = scalar_select 0, %s9, %s7
  $region1: #{d4pg_critic_forward.1} parent=0
    #allocation2 [shape = 'u8[32768]{0}', space=vmem, size = 0x8000, scoped, tag = 'input window, operand 1, single buffered']
    #allocation3 [shape = 's32[1]{0}', space=sflag, size = 0x4, scoped, tag = 'scoped memory for d4pg_critic_forward.1']
    #allocation4 [shape = 'u8[393216]{0}', space=vmem, size = 0x60000, scoped, tag = 'input window, operand 2, single buffered']
    #allocation5 [shape = 's32[1]{0}', space=sflag, size = 0x4, scoped, tag = 'scoped memory for d4pg_critic_forward.1']
    #allocation6 [shape = 'u8[24576]{0}', space=vmem, size = 0x6000, scoped, tag = 'input window, operand 3, single buffered']
    #allocation7 [shape = 'u8[98304]{0}', space=vmem, size = 0x18000, scoped, tag = 'input window, operand 4, single buffered']
    #allocation8 [shape = 's32[1]{0}', space=sflag, size = 0x4, scoped, tag = 'scoped memory for d4pg_critic_forward.1']
    %11 = vsyncpa [#allocation3], 0
    %12 = vsyncpa [#allocation5], 0
    %13 = vsyncpa [#allocation8], 0
    // Predicated region
    $region2: #{d4pg_critic_forward.1} parent=1 // pred_check
      _
    $region3: #{d4pg_critic_forward.1} parent=1 // pred_check_branch
      %15 = sbr.rel (0) target = $region5
    $region4: #{d4pg_critic_forward.1} parent=1 // pred_region
      _
    $region5: #{d4pg_critic_forward.1} parent=1 // pred_fallthru
      _
    // Predicated region
    $region6: #{d4pg_critic_forward.1} parent=1 // pred_check
      _
    $region7: #{d4pg_critic_forward.1} parent=1 // pred_check_branch
      %17 = sbr.rel (0) target = $region9
    $region8: #{d4pg_critic_forward.1} parent=1 // pred_region
      %s19 = ssub.s32 1024, 1024
      %20 = vsyncadd [#allocation3], %s19
      %s21 = sshll.u32 [#allocation2], 4
      %s22 = int_to_ptr.vmem [resolvable:$true] %s21
      %27 = dma.hbm_to_vmem [thread:$0]  %s1, 1024, %s22, [#allocation3], 256, 256, 16
    $region9: #{d4pg_critic_forward.1} parent=1 // pred_fallthru
      _
    // Predicated region
    $region10: #{d4pg_critic_forward.1} parent=1 // pred_check
      _
    $region11: #{d4pg_critic_forward.1} parent=1 // pred_check_branch
      %29 = sbr.rel (0) target = $region13
    $region12: #{d4pg_critic_forward.1} parent=1 // pred_region
      %s31 = ssub.s32 12288, 12288
      %32 = vsyncadd [#allocation5], %s31
      %s33 = sshll.u32 [#allocation4], 4
      %s34 = int_to_ptr.vmem [resolvable:$true] %s33
      %39 = dma.hbm_to_vmem [thread:$0]  %s2, 12288, %s34, [#allocation5], 192, 192, 12
    $region13: #{d4pg_critic_forward.1} parent=1 // pred_fallthru
      _
    // Predicated region
    $region14: #{d4pg_critic_forward.1} parent=1 // pred_check
      _
    $region15: #{d4pg_critic_forward.1} parent=1 // pred_check_branch
      %41 = sbr.rel (0) target = $region17
    $region16: #{d4pg_critic_forward.1} parent=1 // pred_region
      %s43 = ssub.s32 768, 768
      %44 = vsyncadd [#allocation5], %s43
      %s45 = sshll.u32 [#allocation6], 4
      %s46 = int_to_ptr.vmem [resolvable:$true] %s45
      %51 = dma.hbm_to_vmem [thread:$0]  %s3, 768, %s46, [#allocation5], 192, 192, 12
    $region17: #{d4pg_critic_forward.1} parent=1 // pred_fallthru
      _
    // Predicated region
    $region18: #{d4pg_critic_forward.1} parent=1 // pred_check
      _
    $region19: #{d4pg_critic_forward.1} parent=1 // pred_check_branch
      %53 = sbr.rel (0) target = $region21
    $region20: #{d4pg_critic_forward.1} parent=1 // pred_region
      %s55 = ssub.s32 3072, 3072
      %56 = vsyncadd [#allocation8], %s55
      %s57 = sshll.u32 [#allocation7], 4
      %s58 = int_to_ptr.vmem [resolvable:$true] %s57
      %63 = dma.hbm_to_vmem [thread:$0]  %s4, 3072, %s58, [#allocation8], 64, 64, 4
    $region21: #{d4pg_critic_forward.1} parent=1 // pred_fallthru
      _
    // Predicated region
    $region22: #{d4pg_critic_forward.1} parent=1 // pred_check
      _
    $region23: #{d4pg_critic_forward.1} parent=1 // pred_check_branch
      %65 = sbr.rel (0) target = $region25
    $region24: #{d4pg_critic_forward.1} parent=1 // pred_region
      _
    $region25: #{d4pg_critic_forward.1} parent=1 // pred_fallthru
      _
    // Predicated region
    $region26: #{d4pg_critic_forward.1} parent=1 // pred_check
      _
    $region27: #{d4pg_critic_forward.1} parent=1 // pred_check_branch
      %67 = sbr.rel (0) target = $region29
    $region28: #{d4pg_critic_forward.1} parent=1 // pred_region
      %68 = dma.done [#allocation3], 1024
    $region29: #{d4pg_critic_forward.1} parent=1 // pred_fallthru
      _
    // Predicated region
    $region30: #{d4pg_critic_forward.1} parent=1 // pred_check
      _
    $region31: #{d4pg_critic_forward.1} parent=1 // pred_check_branch
      %70 = sbr.rel (0) target = $region33
    $region32: #{d4pg_critic_forward.1} parent=1 // pred_region
      %71 = dma.done [#allocation5], 12288
    $region33: #{d4pg_critic_forward.1} parent=1 // pred_fallthru
      _
    // Predicated region
    $region34: #{d4pg_critic_forward.1} parent=1 // pred_check
      _
    $region35: #{d4pg_critic_forward.1} parent=1 // pred_check_branch
      %73 = sbr.rel (0) target = $region37
    $region36: #{d4pg_critic_forward.1} parent=1 // pred_region
      %74 = dma.done [#allocation5], 768
    $region37: #{d4pg_critic_forward.1} parent=1 // pred_fallthru
      _
    // Predicated region
    $region38: #{d4pg_critic_forward.1} parent=1 // pred_check
      _
    $region39: #{d4pg_critic_forward.1} parent=1 // pred_check_branch
      %76 = sbr.rel (0) target = $region41
    $region40: #{d4pg_critic_forward.1} parent=1 // pred_region
      %77 = dma.done [#allocation8], 3072
    $region41: #{d4pg_critic_forward.1} parent=1 // pred_fallthru
      _
    %v79 = vld [vmem:[%s0] sm:$0xf]
    %v80 = vld [vmem:[%s0 + $0x4] sm:$0xf]
    %v81 = vld [vmem:[%s5] ss:$4 sm:$0xf]
    %s82 = scalar_lea.vmem %s5, 1
    %v83 = vld [vmem:[%s82] ss:$4 sm:$0x7]
    %v84 = vld [vmem:[%s5 + $0x2] sm:$0x1]
    %v85 = vld [vmem:[#allocation2] sm:$0xff]
    %v86 = vld [vmem:[#allocation2 + $0x8] sm:$0xff]
    %v87 = vld [vmem:[#allocation2 + $0x10] sm:$0xff]
    %v88 = vld [vmem:[#allocation2 + $0x18] sm:$0xff]
    %v89 = vld [vmem:[#allocation2 + $0x20] sm:$0xff]
    %v90 = vld [vmem:[#allocation2 + $0x28] sm:$0xff]
    %v91 = vld [vmem:[#allocation2 + $0x30] sm:$0x33]
    %v92 = vld [vmem:[#allocation2 + $0x38] sm:$0x33]
    %v94 = vlaneseq
    %v95 = vshrl.u32 %v94, 7
    %v96 = vsub.s32 0, %v95
    %v97 = vrot.slane %v81, %v96
    %v98 = vlaneseq
    %v99 = vshrl.u32 %v98, 7
    %v100 = vsub.s32 1, %v99
    %v101 = vrot.slane %v81, %v100
    %v102 = vlaneseq
    %v103 = vshrl.u32 %v102, 7
    %v104 = vsub.s32 2, %v103
    %v105 = vrot.slane %v81, %v104
    %v106 = vlaneseq
    %v107 = vshrl.u32 %v106, 7
    %v108 = vsub.s32 3, %v107
    %v109 = vrot.slane %v81, %v108
    %v116 = vunpack.c.l.b16 %v79
    %v117 = vunpack.c.l.b16 %v80
    %v118 = vpack.c.b16 %v117, %v116
    %v127 = vunpack.c.l.b16 %v85
    %v128 = vunpack.c.h.b16 %v85
    %v129 = vunpack.c.l.b16 %v86
    %v130 = vunpack.c.h.b16 %v86
    %v131 = vunpack.c.l.b16 %v87
    %v132 = vunpack.c.h.b16 %v87
    %v133 = vunpack.c.l.b16 %v88
    %v134 = vunpack.c.h.b16 %v88
    %v135 = vunpack.c.l.b16 %v89
    %v136 = vunpack.c.h.b16 %v89
    %v137 = vunpack.c.l.b16 %v90
    %v138 = vunpack.c.h.b16 %v90
    %v139 = vunpack.c.l.b16 %v91
    %v140 = vunpack.c.h.b16 %v91
    %v141 = vunpack.c.l.b16 %v92
    %v142 = vunpack.c.h.b16 %v92
    %v143 = vpack.c.b16 %v131, %v127
    %v144 = vpack.c.b16 %v132, %v128
    %v145 = vpack.c.b16 %v133, %v129
    %v146 = vpack.c.b16 %v134, %v130
    %v147 = vpack.c.b16 %v139, %v135
    %v148 = vpack.c.b16 %v140, %v136
    %v149 = vpack.c.b16 %v141, %v137
    %v150 = vpack.c.b16 %v142, %v138
    %vm155 = vcmask 228352
    %v157 = vsel %vm155, %v118, 0
    %vm159 = vcmask 1045504
    %v161 = vsel %vm159, %v147, 0
    %v164 = vsel %vm159, %v148, 0
    %v167 = vsel %vm159, %v149, 0
    %v170 = vsel %vm159, %v150, 0
    %172 = vmatprep.subr.bf16.mxu0 %v144
    %173 = vmatpush1.bf16.msra.mxu0 %v143
    %174 = vmatprep.subr.bf16.mxu0 %v164
    %175 = vmatpush1.bf16.msra.mxu0 %v161
    %176 = vmatprep.subr.bf16.mxu0 0
    %177 = vmatpush1.bf16.msra.mxu0 0
    %178 = vmatprep.subr.bf16.mxu0 0
    %179 = vmatpush1.bf16.msra.mxu0 0
    %180 = vmatprep.subr.bf16.mxu0 0
    %181 = vmatpush1.bf16.msra.mxu0 0
    %182 = vmatprep.subr.bf16.mxu0 0
    %183 = vmatpush1.bf16.msra.mxu0 0
    %184 = vmatprep.subr.bf16.mxu0 0
    %185 = vmatpush1.bf16.msra.mxu0 0
    %186 = vmatprep.subr.bf16.mxu0 0
    %187 = vmatpush1.bf16.msra.mxu0 0
    %188 = vmatprep.subr.bf16.mxu0 0
    %189 = vmatpush1.bf16.msra.mxu0 0
    %190 = vmatprep.subr.bf16.mxu0 0
    %191 = vmatpush1.bf16.msra.mxu0 0
    %192 = vmatprep.subr.bf16.mxu0 0
    %193 = vmatpush1.bf16.msra.mxu0 0
    %194 = vmatprep.subr.bf16.mxu0 0
    %195 = vmatpush1.bf16.msra.mxu0 0
    %196 = vmatprep.subr.bf16.mxu0 0
    %197 = vmatpush1.bf16.msra.mxu0 0
    %198 = vmatprep.subr.bf16.mxu0 0
    %199 = vmatpush1.bf16.msra.mxu0 0
    %200 = vmatprep.subr.bf16.mxu0 0
    %201 = vmatpush1.bf16.msra.mxu0 0
    %202 = vmatprep.subr.bf16.mxu0 0
    %203 = vmatpush1.bf16.msra.mxu0 0
    %204 = vmatprep.mubr.bf16.mxu0 0
    %205 = vmatmul.mubr.bf16.gmra.mrb[0].mxu0 %v157
    %v206 = vpop.f32.mrb[0].mxu0
    %v207 = vadd.f32 %v97, %v206
    %v208 = vpop.f32.mrb[0].mxu0
    %v209 = vadd.f32 %v101, %v208
    %v210 = vpop.f32.mrb[0].mxu0
    %v211 = vadd.f32 %v97, %v210
    %v212 = vpop.f32.mrb[0].mxu0
    %v213 = vadd.f32 %v101, %v212
    %214 = vdwg.mxu0
    %215 = vmatprep.subr.bf16.mxu0 %v146
    %216 = vmatpush1.bf16.msra.mxu0 %v145
    %217 = vmatprep.subr.bf16.mxu0 %v170
    %218 = vmatpush1.bf16.msra.mxu0 %v167
    %219 = vmatprep.subr.bf16.mxu0 0
    %220 = vmatpush1.bf16.msra.mxu0 0
    %221 = vmatprep.subr.bf16.mxu0 0
    %222 = vmatpush1.bf16.msra.mxu0 0
    %223 = vmatprep.subr.bf16.mxu0 0
    %224 = vmatpush1.bf16.msra.mxu0 0
    %225 = vmatprep.subr.bf16.mxu0 0
    %226 = vmatpush1.bf16.msra.mxu0 0
    %227 = vmatprep.subr.bf16.mxu0 0
    %228 = vmatpush1.bf16.msra.mxu0 0
    %229 = vmatprep.subr.bf16.mxu0 0
    %230 = vmatpush1.bf16.msra.mxu0 0
    %231 = vmatprep.subr.bf16.mxu0 0
    %232 = vmatpush1.bf16.msra.mxu0 0
    %233 = vmatprep.subr.bf16.mxu0 0
    %234 = vmatpush1.bf16.msra.mxu0 0
    %235 = vmatprep.subr.bf16.mxu0 0
    %236 = vmatpush1.bf16.msra.mxu0 0
    %237 = vmatprep.subr.bf16.mxu0 0
    %238 = vmatpush1.bf16.msra.mxu0 0
    %239 = vmatprep.subr.bf16.mxu0 0
    %240 = vmatpush1.bf16.msra.mxu0 0
    %241 = vmatprep.subr.bf16.mxu0 0
    %242 = vmatpush1.bf16.msra.mxu0 0
    %243 = vmatprep.subr.bf16.mxu0 0
    %244 = vmatpush1.bf16.msra.mxu0 0
    %245 = vmatprep.subr.bf16.mxu0 0
    %246 = vmatpush1.bf16.msra.mxu0 0
    %247 = vmatprep.mubr.bf16.mxu0 0
    %248 = vmatmul.mubr.bf16.gmra.mrb[0].mxu0 %v157
    %v249 = vpop.f32.mrb[0].mxu0
    %v250 = vadd.f32 %v105, %v249
    %v251 = vpop.f32.mrb[0].mxu0
    %v252 = vadd.f32 %v109, %v251
    %v253 = vpop.f32.mrb[0].mxu0
    %v254 = vadd.f32 %v105, %v253
    %v255 = vpop.f32.mrb[0].mxu0
    %v256 = vadd.f32 %v109, %v255
    %257 = vdwg.mxu0
    %v258 = vmax.f32 %v207, 0.0
    %v259 = vmax.f32 %v209, 0.0
    %v260 = vmax.f32 %v250, 0.0
    %v261 = vmax.f32 %v252, 0.0
    %v262 = vmax.f32 %v211, 0.0
    %v263 = vmax.f32 %v213, 0.0
    %v264 = vmax.f32 %v254, 0.0
    %v265 = vmax.f32 %v256, 0.0
    %v266 = vpack.c.bf16 %v262, %v258
    %v267 = vpack.c.bf16 %v263, %v259
    %v268 = vpack.c.bf16 %v264, %v260
    %v269 = vpack.c.bf16 %v265, %v261
    %v270 = vld [vmem:[#allocation4] sm:$0xff]
    %v271 = vld [vmem:[#allocation4 + $0x8] sm:$0xf]
    %v272 = vld [vmem:[#allocation4 + $0xc] sm:$0xff]
    %v273 = vld [vmem:[#allocation4 + $0x14] sm:$0xf]
    %v274 = vld [vmem:[#allocation4 + $0x18] sm:$0xff]
    %v275 = vld [vmem:[#allocation4 + $0x20] sm:$0xf]
    %v276 = vld [vmem:[#allocation4 + $0x24] sm:$0xff]
    %v277 = vld [vmem:[#allocation4 + $0x2c] sm:$0xf]
    %v278 = vld [vmem:[#allocation4 + $0x30] sm:$0xff]
    %v279 = vld [vmem:[#allocation4 + $0x38] sm:$0xf]
    %v280 = vld [vmem:[#allocation4 + $0x3c] sm:$0xff]
    %v281 = vld [vmem:[#allocation4 + $0x44] sm:$0xf]
    %v282 = vld [vmem:[#allocation4 + $0x48] sm:$0xff]
    %v283 = vld [vmem:[#allocation4 + $0x50] sm:$0xf]
    %v284 = vld [vmem:[#allocation4 + $0x54] sm:$0xff]
    %v285 = vld [vmem:[#allocation4 + $0x5c] sm:$0xf]
    %v286 = vld [vmem:[#allocation4 + $0x60] sm:$0xff]
    %v287 = vld [vmem:[#allocation4 + $0x68] sm:$0xf]
    %v288 = vld [vmem:[#allocation4 + $0x6c] sm:$0xff]
    %v289 = vld [vmem:[#allocation4 + $0x74] sm:$0xf]
    %v290 = vld [vmem:[#allocation4 + $0x78] sm:$0xff]
    %v291 = vld [vmem:[#allocation4 + $0x80] sm:$0xf]
    %v292 = vld [vmem:[#allocation4 + $0x84] sm:$0xff]
    %v293 = vld [vmem:[#allocation4 + $0x8c] sm:$0xf]
    %v294 = vld [vmem:[#allocation4 + $0x90] sm:$0xff]
    %v295 = vld [vmem:[#allocation4 + $0x98] sm:$0xf]
    %v296 = vld [vmem:[#allocation4 + $0x9c] sm:$0xff]
    %v297 = vld [vmem:[#allocation4 + $0xa4] sm:$0xf]
    %v298 = vld [vmem:[#allocation4 + $0xa8] sm:$0xff]
    %v299 = vld [vmem:[#allocation4 + $0xb0] sm:$0xf]
    %v300 = vld [vmem:[#allocation4 + $0xb4] sm:$0xff]
    %v301 = vld [vmem:[#allocation4 + $0xbc] sm:$0xf]
    %v302 = vld [vmem:[#allocation4 + $0xc0] sm:$0xff]
    %v303 = vld [vmem:[#allocation4 + $0xc8] sm:$0xf]
    %v304 = vld [vmem:[#allocation4 + $0xcc] sm:$0xff]
    %v305 = vld [vmem:[#allocation4 + $0xd4] sm:$0xf]
    %v306 = vld [vmem:[#allocation4 + $0xd8] sm:$0xff]
    %v307 = vld [vmem:[#allocation4 + $0xe0] sm:$0xf]
    %v308 = vld [vmem:[#allocation4 + $0xe4] sm:$0xff]
    %v309 = vld [vmem:[#allocation4 + $0xec] sm:$0xf]
    %v310 = vld [vmem:[#allocation4 + $0xf0] sm:$0xff]
    %v311 = vld [vmem:[#allocation4 + $0xf8] sm:$0xf]
    %v312 = vld [vmem:[#allocation4 + $0xfc] sm:$0xff]
    %v313 = vld [vmem:[#allocation4 + $0x104] sm:$0xf]
    %v314 = vld [vmem:[#allocation4 + $0x108] sm:$0xff]
    %v315 = vld [vmem:[#allocation4 + $0x110] sm:$0xf]
    %v316 = vld [vmem:[#allocation4 + $0x114] sm:$0xff]
    %v317 = vld [vmem:[#allocation4 + $0x11c] sm:$0xf]
    %v318 = vld [vmem:[#allocation4 + $0x120] sm:$0xff]
    %v319 = vld [vmem:[#allocation4 + $0x128] sm:$0xf]
    %v320 = vld [vmem:[#allocation4 + $0x12c] sm:$0xff]
    %v321 = vld [vmem:[#allocation4 + $0x134] sm:$0xf]
    %v322 = vld [vmem:[#allocation4 + $0x138] sm:$0xff]
    %v323 = vld [vmem:[#allocation4 + $0x140] sm:$0xf]
    %v324 = vld [vmem:[#allocation4 + $0x144] sm:$0xff]
    %v325 = vld [vmem:[#allocation4 + $0x14c] sm:$0xf]
    %v326 = vld [vmem:[#allocation4 + $0x150] sm:$0xff]
    %v327 = vld [vmem:[#allocation4 + $0x158] sm:$0xf]
    %v328 = vld [vmem:[#allocation4 + $0x15c] sm:$0xff]
    %v329 = vld [vmem:[#allocation4 + $0x164] sm:$0xf]
    %v330 = vld [vmem:[#allocation4 + $0x168] sm:$0xff]
    %v331 = vld [vmem:[#allocation4 + $0x170] sm:$0xf]
    %v332 = vld [vmem:[#allocation4 + $0x174] sm:$0xff]
    %v333 = vld [vmem:[#allocation4 + $0x17c] sm:$0xf]
    %v334 = vld [vmem:[#allocation4 + $0x180] sm:$0xff]
    %v335 = vld [vmem:[#allocation4 + $0x188] sm:$0xf]
    %v336 = vld [vmem:[#allocation4 + $0x18c] sm:$0xff]
    %v337 = vld [vmem:[#allocation4 + $0x194] sm:$0xf]
    %v338 = vld [vmem:[#allocation4 + $0x198] sm:$0xff]
    %v339 = vld [vmem:[#allocation4 + $0x1a0] sm:$0xf]
    %v340 = vld [vmem:[#allocation4 + $0x1a4] sm:$0xff]
    %v341 = vld [vmem:[#allocation4 + $0x1ac] sm:$0xf]
    %v342 = vld [vmem:[#allocation4 + $0x1b0] sm:$0xff]
    %v343 = vld [vmem:[#allocation4 + $0x1b8] sm:$0xf]
    %v344 = vld [vmem:[#allocation4 + $0x1bc] sm:$0xff]
    %v345 = vld [vmem:[#allocation4 + $0x1c4] sm:$0xf]
    %v346 = vld [vmem:[#allocation4 + $0x1c8] sm:$0xff]
    %v347 = vld [vmem:[#allocation4 + $0x1d0] sm:$0xf]
    %v348 = vld [vmem:[#allocation4 + $0x1d4] sm:$0xff]
    %v349 = vld [vmem:[#allocation4 + $0x1dc] sm:$0xf]
    %v350 = vld [vmem:[#allocation4 + $0x1e0] sm:$0xff]
    %v351 = vld [vmem:[#allocation4 + $0x1e8] sm:$0xf]
    %v352 = vld [vmem:[#allocation4 + $0x1ec] sm:$0xff]
    %v353 = vld [vmem:[#allocation4 + $0x1f4] sm:$0xf]
    %v354 = vld [vmem:[#allocation4 + $0x1f8] sm:$0xff]
    %v355 = vld [vmem:[#allocation4 + $0x200] sm:$0xf]
    %v356 = vld [vmem:[#allocation4 + $0x204] sm:$0xff]
    %v357 = vld [vmem:[#allocation4 + $0x20c] sm:$0xf]
    %v358 = vld [vmem:[#allocation4 + $0x210] sm:$0xff]
    %v359 = vld [vmem:[#allocation4 + $0x218] sm:$0xf]
    %v360 = vld [vmem:[#allocation4 + $0x21c] sm:$0xff]
    %v361 = vld [vmem:[#allocation4 + $0x224] sm:$0xf]
    %v362 = vld [vmem:[#allocation4 + $0x228] sm:$0xff]
    %v363 = vld [vmem:[#allocation4 + $0x230] sm:$0xf]
    %v364 = vld [vmem:[#allocation4 + $0x234] sm:$0xff]
    %v365 = vld [vmem:[#allocation4 + $0x23c] sm:$0xf]
    %v366 = vld [vmem:[#allocation4 + $0x240] sm:$0xff]
    %v367 = vld [vmem:[#allocation4 + $0x248] sm:$0xf]
    %v368 = vld [vmem:[#allocation4 + $0x24c] sm:$0xff]
    %v369 = vld [vmem:[#allocation4 + $0x254] sm:$0xf]
    %v370 = vld [vmem:[#allocation4 + $0x258] sm:$0xff]
    %v371 = vld [vmem:[#allocation4 + $0x260] sm:$0xf]
    %v372 = vld [vmem:[#allocation4 + $0x264] sm:$0xff]
    %v373 = vld [vmem:[#allocation4 + $0x26c] sm:$0xf]
    %v374 = vld [vmem:[#allocation4 + $0x270] sm:$0xff]
    %v375 = vld [vmem:[#allocation4 + $0x278] sm:$0xf]
    %v376 = vld [vmem:[#allocation4 + $0x27c] sm:$0xff]
    %v377 = vld [vmem:[#allocation4 + $0x284] sm:$0xf]
    %v378 = vld [vmem:[#allocation4 + $0x288] sm:$0xff]
    %v379 = vld [vmem:[#allocation4 + $0x290] sm:$0xf]
    %v380 = vld [vmem:[#allocation4 + $0x294] sm:$0xff]
    %v381 = vld [vmem:[#allocation4 + $0x29c] sm:$0xf]
    %v382 = vld [vmem:[#allocation4 + $0x2a0] sm:$0xff]
    %v383 = vld [vmem:[#allocation4 + $0x2a8] sm:$0xf]
    %v384 = vld [vmem:[#allocation4 + $0x2ac] sm:$0xff]
    %v385 = vld [vmem:[#allocation4 + $0x2b4] sm:$0xf]
    %v386 = vld [vmem:[#allocation4 + $0x2b8] sm:$0xff]
    %v387 = vld [vmem:[#allocation4 + $0x2c0] sm:$0xf]
    %v388 = vld [vmem:[#allocation4 + $0x2c4] sm:$0xff]
    %v389 = vld [vmem:[#allocation4 + $0x2cc] sm:$0xf]
    %v390 = vld [vmem:[#allocation4 + $0x2d0] sm:$0xff]
    %v391 = vld [vmem:[#allocation4 + $0x2d8] sm:$0xf]
    %v392 = vld [vmem:[#allocation4 + $0x2dc] sm:$0xff]
    %v393 = vld [vmem:[#allocation4 + $0x2e4] sm:$0xf]
    %v394 = vld [vmem:[#allocation4 + $0x2e8] sm:$0xff]
    %v395 = vld [vmem:[#allocation4 + $0x2f0] sm:$0xf]
    %v396 = vld [vmem:[#allocation4 + $0x2f4] sm:$0xff]
    %v397 = vld [vmem:[#allocation4 + $0x2fc] sm:$0xf]
    %v398 = vld [vmem:[#allocation6] sm:$0xff]
    %v399 = vld [vmem:[#allocation6 + $0x8] sm:$0xf]
    %v400 = vld [vmem:[#allocation6 + $0xc] sm:$0xff]
    %v401 = vld [vmem:[#allocation6 + $0x14] sm:$0xf]
    %v402 = vld [vmem:[#allocation6 + $0x18] sm:$0xff]
    %v403 = vld [vmem:[#allocation6 + $0x20] sm:$0xf]
    %v404 = vld [vmem:[#allocation6 + $0x24] sm:$0x33]
    %v405 = vld [vmem:[#allocation6 + $0x2c] sm:$0x3]
    %v414 = vunpack.c.l.b16 %v398
    %v415 = vunpack.c.h.b16 %v398
    %v416 = vunpack.c.l.b16 %v399
    %v417 = vunpack.c.l.b16 %v400
    %v418 = vunpack.c.h.b16 %v400
    %v419 = vunpack.c.l.b16 %v401
    %v420 = vunpack.c.l.b16 %v402
    %v421 = vunpack.c.h.b16 %v402
    %v422 = vunpack.c.l.b16 %v403
    %v423 = vunpack.c.l.b16 %v404
    %v424 = vunpack.c.h.b16 %v404
    %v425 = vunpack.c.l.b16 %v405
    %v426 = vpack.c.b16 %v417, %v414
    %v427 = vpack.c.b16 %v418, %v415
    %v428 = vpack.c.b16 %v419, %v416
    %v429 = vpack.c.b16 %v423, %v420
    %v430 = vpack.c.b16 %v424, %v421
    %v431 = vpack.c.b16 %v425, %v422
    %v436 = vsel %vm159, %v429, 0
    %v439 = vsel %vm159, %v430, 0
    %v442 = vsel %vm159, %v431, 0
    %444 = vmatprep.subr.bf16.mxu0 %v427
    %445 = vmatpush1.bf16.msra.mxu0 %v426
    %446 = vmatprep.subr.bf16.mxu0 %v439
    %447 = vmatpush1.bf16.msra.mxu0 %v436
    %448 = vmatprep.subr.bf16.mxu0 0
    %449 = vmatpush1.bf16.msra.mxu0 0
    %450 = vmatprep.subr.bf16.mxu0 0
    %451 = vmatpush1.bf16.msra.mxu0 0
    %452 = vmatprep.subr.bf16.mxu0 0
    %453 = vmatpush1.bf16.msra.mxu0 0
    %454 = vmatprep.subr.bf16.mxu0 0
    %455 = vmatpush1.bf16.msra.mxu0 0
    %456 = vmatprep.subr.bf16.mxu0 0
    %457 = vmatpush1.bf16.msra.mxu0 0
    %458 = vmatprep.subr.bf16.mxu0 0
    %459 = vmatpush1.bf16.msra.mxu0 0
    %460 = vmatprep.subr.bf16.mxu0 0
    %461 = vmatpush1.bf16.msra.mxu0 0
    %462 = vmatprep.subr.bf16.mxu0 0
    %463 = vmatpush1.bf16.msra.mxu0 0
    %464 = vmatprep.subr.bf16.mxu0 0
    %465 = vmatpush1.bf16.msra.mxu0 0
    %466 = vmatprep.subr.bf16.mxu0 0
    %467 = vmatpush1.bf16.msra.mxu0 0
    %468 = vmatprep.subr.bf16.mxu0 0
    %469 = vmatpush1.bf16.msra.mxu0 0
    %470 = vmatprep.subr.bf16.mxu0 0
    %471 = vmatpush1.bf16.msra.mxu0 0
    %472 = vmatprep.subr.bf16.mxu0 0
    %473 = vmatpush1.bf16.msra.mxu0 0
    %474 = vmatprep.subr.bf16.mxu0 0
    %475 = vmatpush1.bf16.msra.mxu0 0
    %476 = vmatprep.mubr.bf16.mxu0 0
    %477 = vmatmul.mubr.bf16.gmra.mrb[0].mxu0 %v157
    %v478 = vpop.f32.mrb[0].mxu0
    %v479 = vadd.f32 0.0, %v478
    %v480 = vpop.f32.mrb[0].mxu0
    %v481 = vadd.f32 0.0, %v480
    %v482 = vpop.f32.mrb[0].mxu0
    %v483 = vadd.f32 0.0, %v482
    %v484 = vpop.f32.mrb[0].mxu0
    %v485 = vadd.f32 0.0, %v484
    %486 = vdwg.mxu0
    %487 = vmatprep.subr.bf16.mxu0 0
    %488 = vmatpush1.bf16.msra.mxu0 %v428
    %489 = vmatprep.subr.bf16.mxu0 0
    %490 = vmatpush1.bf16.msra.mxu0 %v442
    %491 = vmatprep.subr.bf16.mxu0 0
    %492 = vmatpush1.bf16.msra.mxu0 0
    %493 = vmatprep.subr.bf16.mxu0 0
    %494 = vmatpush1.bf16.msra.mxu0 0
    %495 = vmatprep.subr.bf16.mxu0 0
    %496 = vmatpush1.bf16.msra.mxu0 0
    %497 = vmatprep.subr.bf16.mxu0 0
    %498 = vmatpush1.bf16.msra.mxu0 0
    %499 = vmatprep.subr.bf16.mxu0 0
    %500 = vmatpush1.bf16.msra.mxu0 0
    %501 = vmatprep.subr.bf16.mxu0 0
    %502 = vmatpush1.bf16.msra.mxu0 0
    %503 = vmatprep.subr.bf16.mxu0 0
    %504 = vmatpush1.bf16.msra.mxu0 0
    %505 = vmatprep.subr.bf16.mxu0 0
    %506 = vmatpush1.bf16.msra.mxu0 0
    %507 = vmatprep.subr.bf16.mxu0 0
    %508 = vmatpush1.bf16.msra.mxu0 0
    %509 = vmatprep.subr.bf16.mxu0 0
    %510 = vmatpush1.bf16.msra.mxu0 0
    %511 = vmatprep.subr.bf16.mxu0 0
    %512 = vmatpush1.bf16.msra.mxu0 0
    %513 = vmatprep.subr.bf16.mxu0 0
    %514 = vmatpush1.bf16.msra.mxu0 0
    %515 = vmatprep.subr.bf16.mxu0 0
    %516 = vmatpush1.bf16.msra.mxu0 0
    %517 = vmatprep.subr.bf16.mxu0 0
    %518 = vmatpush1.bf16.msra.mxu0 0
    %519 = vmatprep.mubr.bf16.mxu0 0
    %520 = vmatmul.mubr.bf16.gmra.mrb[0].mxu0 %v157
    %v521 = vpop.f32.mrb[0].mxu0
    %v522 = vadd.f32 0.0, %v521
    %v523 = vpop.f32.mrb[0].mxu0
    %v524 = vpop.f32.mrb[0].mxu0
    %v525 = vadd.f32 0.0, %v524
    %v526 = vpop.f32.mrb[0].mxu0
    %527 = vdwg.mxu0
    %v656 = vunpack.c.l.b16 %v270
    %v657 = vunpack.c.h.b16 %v270
    %v658 = vunpack.c.l.b16 %v271
    %v659 = vunpack.c.l.b16 %v272
    %v660 = vunpack.c.h.b16 %v272
    %v661 = vunpack.c.l.b16 %v273
    %v662 = vunpack.c.l.b16 %v274
    %v663 = vunpack.c.h.b16 %v274
    %v664 = vunpack.c.l.b16 %v275
    %v665 = vunpack.c.l.b16 %v276
    %v666 = vunpack.c.h.b16 %v276
    %v667 = vunpack.c.l.b16 %v277
    %v668 = vunpack.c.l.b16 %v278
    %v669 = vunpack.c.h.b16 %v278
    %v670 = vunpack.c.l.b16 %v279
    %v671 = vunpack.c.l.b16 %v280
    %v672 = vunpack.c.h.b16 %v280
    %v673 = vunpack.c.l.b16 %v281
    %v674 = vunpack.c.l.b16 %v282
    %v675 = vunpack.c.h.b16 %v282
    %v676 = vunpack.c.l.b16 %v283
    %v677 = vunpack.c.l.b16 %v284
    %v678 = vunpack.c.h.b16 %v284
    %v679 = vunpack.c.l.b16 %v285
    %v680 = vunpack.c.l.b16 %v286
    %v681 = vunpack.c.h.b16 %v286
    %v682 = vunpack.c.l.b16 %v287
    %v683 = vunpack.c.l.b16 %v288
    %v684 = vunpack.c.h.b16 %v288
    %v685 = vunpack.c.l.b16 %v289
    %v686 = vunpack.c.l.b16 %v290
    %v687 = vunpack.c.h.b16 %v290
    %v688 = vunpack.c.l.b16 %v291
    %v689 = vunpack.c.l.b16 %v292
    %v690 = vunpack.c.h.b16 %v292
    %v691 = vunpack.c.l.b16 %v293
    %v692 = vunpack.c.l.b16 %v294
    %v693 = vunpack.c.h.b16 %v294
    %v694 = vunpack.c.l.b16 %v295
    %v695 = vunpack.c.l.b16 %v296
    %v696 = vunpack.c.h.b16 %v296
    %v697 = vunpack.c.l.b16 %v297
    %v698 = vunpack.c.l.b16 %v298
    %v699 = vunpack.c.h.b16 %v298
    %v700 = vunpack.c.l.b16 %v299
    %v701 = vunpack.c.l.b16 %v300
    %v702 = vunpack.c.h.b16 %v300
    %v703 = vunpack.c.l.b16 %v301
    %v704 = vunpack.c.l.b16 %v302
    %v705 = vunpack.c.h.b16 %v302
    %v706 = vunpack.c.l.b16 %v303
    %v707 = vunpack.c.l.b16 %v304
    %v708 = vunpack.c.h.b16 %v304
    %v709 = vunpack.c.l.b16 %v305
    %v710 = vunpack.c.l.b16 %v306
    %v711 = vunpack.c.h.b16 %v306
    %v712 = vunpack.c.l.b16 %v307
    %v713 = vunpack.c.l.b16 %v308
    %v714 = vunpack.c.h.b16 %v308
    %v715 = vunpack.c.l.b16 %v309
    %v716 = vunpack.c.l.b16 %v310
    %v717 = vunpack.c.h.b16 %v310
    %v718 = vunpack.c.l.b16 %v311
    %v719 = vunpack.c.l.b16 %v312
    %v720 = vunpack.c.h.b16 %v312
    %v721 = vunpack.c.l.b16 %v313
    %v722 = vunpack.c.l.b16 %v314
    %v723 = vunpack.c.h.b16 %v314
    %v724 = vunpack.c.l.b16 %v315
    %v725 = vunpack.c.l.b16 %v316
    %v726 = vunpack.c.h.b16 %v316
    %v727 = vunpack.c.l.b16 %v317
    %v728 = vunpack.c.l.b16 %v318
    %v729 = vunpack.c.h.b16 %v318
    %v730 = vunpack.c.l.b16 %v319
    %v731 = vunpack.c.l.b16 %v320
    %v732 = vunpack.c.h.b16 %v320
    %v733 = vunpack.c.l.b16 %v321
    %v734 = vunpack.c.l.b16 %v322
    %v735 = vunpack.c.h.b16 %v322
    %v736 = vunpack.c.l.b16 %v323
    %v737 = vunpack.c.l.b16 %v324
    %v738 = vunpack.c.h.b16 %v324
    %v739 = vunpack.c.l.b16 %v325
    %v740 = vunpack.c.l.b16 %v326
    %v741 = vunpack.c.h.b16 %v326
    %v742 = vunpack.c.l.b16 %v327
    %v743 = vunpack.c.l.b16 %v328
    %v744 = vunpack.c.h.b16 %v328
    %v745 = vunpack.c.l.b16 %v329
    %v746 = vunpack.c.l.b16 %v330
    %v747 = vunpack.c.h.b16 %v330
    %v748 = vunpack.c.l.b16 %v331
    %v749 = vunpack.c.l.b16 %v332
    %v750 = vunpack.c.h.b16 %v332
    %v751 = vunpack.c.l.b16 %v333
    %v752 = vunpack.c.l.b16 %v334
    %v753 = vunpack.c.h.b16 %v334
    %v754 = vunpack.c.l.b16 %v335
    %v755 = vunpack.c.l.b16 %v336
    %v756 = vunpack.c.h.b16 %v336
    %v757 = vunpack.c.l.b16 %v337
    %v758 = vunpack.c.l.b16 %v338
    %v759 = vunpack.c.h.b16 %v338
    %v760 = vunpack.c.l.b16 %v339
    %v761 = vunpack.c.l.b16 %v340
    %v762 = vunpack.c.h.b16 %v340
    %v763 = vunpack.c.l.b16 %v341
    %v764 = vunpack.c.l.b16 %v342
    %v765 = vunpack.c.h.b16 %v342
    %v766 = vunpack.c.l.b16 %v343
    %v767 = vunpack.c.l.b16 %v344
    %v768 = vunpack.c.h.b16 %v344
    %v769 = vunpack.c.l.b16 %v345
    %v770 = vunpack.c.l.b16 %v346
    %v771 = vunpack.c.h.b16 %v346
    %v772 = vunpack.c.l.b16 %v347
    %v773 = vunpack.c.l.b16 %v348
    %v774 = vunpack.c.h.b16 %v348
    %v775 = vunpack.c.l.b16 %v349
    %v776 = vunpack.c.l.b16 %v350
    %v777 = vunpack.c.h.b16 %v350
    %v778 = vunpack.c.l.b16 %v351
    %v779 = vunpack.c.l.b16 %v352
    %v780 = vunpack.c.h.b16 %v352
    %v781 = vunpack.c.l.b16 %v353
    %v782 = vunpack.c.l.b16 %v354
    %v783 = vunpack.c.h.b16 %v354
    %v784 = vunpack.c.l.b16 %v355
    %v785 = vunpack.c.l.b16 %v356
    %v786 = vunpack.c.h.b16 %v356
    %v787 = vunpack.c.l.b16 %v357
    %v788 = vunpack.c.l.b16 %v358
    %v789 = vunpack.c.h.b16 %v358
    %v790 = vunpack.c.l.b16 %v359
    %v791 = vunpack.c.l.b16 %v360
    %v792 = vunpack.c.h.b16 %v360
    %v793 = vunpack.c.l.b16 %v361
    %v794 = vunpack.c.l.b16 %v362
    %v795 = vunpack.c.h.b16 %v362
    %v796 = vunpack.c.l.b16 %v363
    %v797 = vunpack.c.l.b16 %v364
    %v798 = vunpack.c.h.b16 %v364
    %v799 = vunpack.c.l.b16 %v365
    %v800 = vunpack.c.l.b16 %v366
    %v801 = vunpack.c.h.b16 %v366
    %v802 = vunpack.c.l.b16 %v367
    %v803 = vunpack.c.l.b16 %v368
    %v804 = vunpack.c.h.b16 %v368
    %v805 = vunpack.c.l.b16 %v369
    %v806 = vunpack.c.l.b16 %v370
    %v807 = vunpack.c.h.b16 %v370
    %v808 = vunpack.c.l.b16 %v371
    %v809 = vunpack.c.l.b16 %v372
    %v810 = vunpack.c.h.b16 %v372
    %v811 = vunpack.c.l.b16 %v373
    %v812 = vunpack.c.l.b16 %v374
    %v813 = vunpack.c.h.b16 %v374
    %v814 = vunpack.c.l.b16 %v375
    %v815 = vunpack.c.l.b16 %v376
    %v816 = vunpack.c.h.b16 %v376
    %v817 = vunpack.c.l.b16 %v377
    %v818 = vunpack.c.l.b16 %v378
    %v819 = vunpack.c.h.b16 %v378
    %v820 = vunpack.c.l.b16 %v379
    %v821 = vunpack.c.l.b16 %v380
    %v822 = vunpack.c.h.b16 %v380
    %v823 = vunpack.c.l.b16 %v381
    %v824 = vunpack.c.l.b16 %v382
    %v825 = vunpack.c.h.b16 %v382
    %v826 = vunpack.c.l.b16 %v383
    %v827 = vunpack.c.l.b16 %v384
    %v828 = vunpack.c.h.b16 %v384
    %v829 = vunpack.c.l.b16 %v385
    %v830 = vunpack.c.l.b16 %v386
    %v831 = vunpack.c.h.b16 %v386
    %v832 = vunpack.c.l.b16 %v387
    %v833 = vunpack.c.l.b16 %v388
    %v834 = vunpack.c.h.b16 %v388
    %v835 = vunpack.c.l.b16 %v389
    %v836 = vunpack.c.l.b16 %v390
    %v837 = vunpack.c.h.b16 %v390
    %v838 = vunpack.c.l.b16 %v391
    %v839 = vunpack.c.l.b16 %v392
    %v840 = vunpack.c.h.b16 %v392
    %v841 = vunpack.c.l.b16 %v393
    %v842 = vunpack.c.l.b16 %v394
    %v843 = vunpack.c.h.b16 %v394
    %v844 = vunpack.c.l.b16 %v395
    %v845 = vunpack.c.l.b16 %v396
    %v846 = vunpack.c.h.b16 %v396
    %v847 = vunpack.c.l.b16 %v397
    %v848 = vpack.c.b16 %v659, %v656
    %v849 = vpack.c.b16 %v660, %v657
    %v850 = vpack.c.b16 %v661, %v658
    %v851 = vpack.c.b16 %v665, %v662
    %v852 = vpack.c.b16 %v666, %v663
    %v853 = vpack.c.b16 %v667, %v664
    %v854 = vpack.c.b16 %v671, %v668
    %v855 = vpack.c.b16 %v672, %v669
    %v856 = vpack.c.b16 %v673, %v670
    %v857 = vpack.c.b16 %v677, %v674
    %v858 = vpack.c.b16 %v678, %v675
    %v859 = vpack.c.b16 %v679, %v676
    %v860 = vpack.c.b16 %v683, %v680
    %v861 = vpack.c.b16 %v684, %v681
    %v862 = vpack.c.b16 %v685, %v682
    %v863 = vpack.c.b16 %v689, %v686
    %v864 = vpack.c.b16 %v690, %v687
    %v865 = vpack.c.b16 %v691, %v688
    %v866 = vpack.c.b16 %v695, %v692
    %v867 = vpack.c.b16 %v696, %v693
    %v868 = vpack.c.b16 %v697, %v694
    %v869 = vpack.c.b16 %v701, %v698
    %v870 = vpack.c.b16 %v702, %v699
    %v871 = vpack.c.b16 %v703, %v700
    %v872 = vpack.c.b16 %v707, %v704
    %v873 = vpack.c.b16 %v708, %v705
    %v874 = vpack.c.b16 %v709, %v706
    %v875 = vpack.c.b16 %v713, %v710
    %v876 = vpack.c.b16 %v714, %v711
    %v877 = vpack.c.b16 %v715, %v712
    %v878 = vpack.c.b16 %v719, %v716
    %v879 = vpack.c.b16 %v720, %v717
    %v880 = vpack.c.b16 %v721, %v718
    %v881 = vpack.c.b16 %v725, %v722
    %v882 = vpack.c.b16 %v726, %v723
    %v883 = vpack.c.b16 %v727, %v724
    %v884 = vpack.c.b16 %v731, %v728
    %v885 = vpack.c.b16 %v732, %v729
    %v886 = vpack.c.b16 %v733, %v730
    %v887 = vpack.c.b16 %v737, %v734
    %v888 = vpack.c.b16 %v738, %v735
    %v889 = vpack.c.b16 %v739, %v736
    %v890 = vpack.c.b16 %v743, %v740
    %v891 = vpack.c.b16 %v744, %v741
    %v892 = vpack.c.b16 %v745, %v742
    %v893 = vpack.c.b16 %v749, %v746
    %v894 = vpack.c.b16 %v750, %v747
    %v895 = vpack.c.b16 %v751, %v748
    %v896 = vpack.c.b16 %v755, %v752
    %v897 = vpack.c.b16 %v756, %v753
    %v898 = vpack.c.b16 %v757, %v754
    %v899 = vpack.c.b16 %v761, %v758
    %v900 = vpack.c.b16 %v762, %v759
    %v901 = vpack.c.b16 %v763, %v760
    %v902 = vpack.c.b16 %v767, %v764
    %v903 = vpack.c.b16 %v768, %v765
    %v904 = vpack.c.b16 %v769, %v766
    %v905 = vpack.c.b16 %v773, %v770
    %v906 = vpack.c.b16 %v774, %v771
    %v907 = vpack.c.b16 %v775, %v772
    %v908 = vpack.c.b16 %v779, %v776
    %v909 = vpack.c.b16 %v780, %v777
    %v910 = vpack.c.b16 %v781, %v778
    %v911 = vpack.c.b16 %v785, %v782
    %v912 = vpack.c.b16 %v786, %v783
    %v913 = vpack.c.b16 %v787, %v784
    %v914 = vpack.c.b16 %v791, %v788
    %v915 = vpack.c.b16 %v792, %v789
    %v916 = vpack.c.b16 %v793, %v790
    %v917 = vpack.c.b16 %v797, %v794
    %v918 = vpack.c.b16 %v798, %v795
    %v919 = vpack.c.b16 %v799, %v796
    %v920 = vpack.c.b16 %v803, %v800
    %v921 = vpack.c.b16 %v804, %v801
    %v922 = vpack.c.b16 %v805, %v802
    %v923 = vpack.c.b16 %v809, %v806
    %v924 = vpack.c.b16 %v810, %v807
    %v925 = vpack.c.b16 %v811, %v808
    %v926 = vpack.c.b16 %v815, %v812
    %v927 = vpack.c.b16 %v816, %v813
    %v928 = vpack.c.b16 %v817, %v814
    %v929 = vpack.c.b16 %v821, %v818
    %v930 = vpack.c.b16 %v822, %v819
    %v931 = vpack.c.b16 %v823, %v820
    %v932 = vpack.c.b16 %v827, %v824
    %v933 = vpack.c.b16 %v828, %v825
    %v934 = vpack.c.b16 %v829, %v826
    %v935 = vpack.c.b16 %v833, %v830
    %v936 = vpack.c.b16 %v834, %v831
    %v937 = vpack.c.b16 %v835, %v832
    %v938 = vpack.c.b16 %v839, %v836
    %v939 = vpack.c.b16 %v840, %v837
    %v940 = vpack.c.b16 %v841, %v838
    %v941 = vpack.c.b16 %v845, %v842
    %v942 = vpack.c.b16 %v846, %v843
    %v943 = vpack.c.b16 %v847, %v844
    %1040 = vmatprep.subr.bf16.mxu0 %v849
    %1041 = vmatpush1.bf16.msra.mxu0 %v848
    %1042 = vmatprep.subr.bf16.mxu0 %v852
    %1043 = vmatpush1.bf16.msra.mxu0 %v851
    %1044 = vmatprep.subr.bf16.mxu0 %v855
    %1045 = vmatpush1.bf16.msra.mxu0 %v854
    %1046 = vmatprep.subr.bf16.mxu0 %v858
    %1047 = vmatpush1.bf16.msra.mxu0 %v857
    %1048 = vmatprep.subr.bf16.mxu0 %v861
    %1049 = vmatpush1.bf16.msra.mxu0 %v860
    %1050 = vmatprep.subr.bf16.mxu0 %v864
    %1051 = vmatpush1.bf16.msra.mxu0 %v863
    %1052 = vmatprep.subr.bf16.mxu0 %v867
    %1053 = vmatpush1.bf16.msra.mxu0 %v866
    %1054 = vmatprep.subr.bf16.mxu0 %v870
    %1055 = vmatpush1.bf16.msra.mxu0 %v869
    %1056 = vmatprep.subr.bf16.mxu0 %v873
    %1057 = vmatpush1.bf16.msra.mxu0 %v872
    %1058 = vmatprep.subr.bf16.mxu0 %v876
    %1059 = vmatpush1.bf16.msra.mxu0 %v875
    %1060 = vmatprep.subr.bf16.mxu0 %v879
    %1061 = vmatpush1.bf16.msra.mxu0 %v878
    %1062 = vmatprep.subr.bf16.mxu0 %v882
    %1063 = vmatpush1.bf16.msra.mxu0 %v881
    %1064 = vmatprep.subr.bf16.mxu0 %v885
    %1065 = vmatpush1.bf16.msra.mxu0 %v884
    %1066 = vmatprep.subr.bf16.mxu0 %v888
    %1067 = vmatpush1.bf16.msra.mxu0 %v887
    %1068 = vmatprep.subr.bf16.mxu0 %v891
    %1069 = vmatpush1.bf16.msra.mxu0 %v890
    %1070 = vmatprep.subr.bf16.mxu0 %v894
    %1071 = vmatpush1.bf16.msra.mxu0 %v893
    %1072 = vmatprep.mubr.bf16.mxu0 %v267
    %1073 = vmatmul.mubr.bf16.gmra.mrb[0].mxu0 %v266
    %v1074 = vpop.f32.mrb[0].mxu0
    %v1075 = vadd.f32 %v479, %v1074
    %v1076 = vpop.f32.mrb[0].mxu0
    %v1077 = vadd.f32 %v481, %v1076
    %v1078 = vpop.f32.mrb[0].mxu0
    %v1079 = vadd.f32 %v483, %v1078
    %v1080 = vpop.f32.mrb[0].mxu0
    %v1081 = vadd.f32 %v485, %v1080
    %1082 = vdwg.mxu0
    %1083 = vmatprep.subr.bf16.mxu0 %v897
    %1084 = vmatpush1.bf16.msra.mxu0 %v896
    %1085 = vmatprep.subr.bf16.mxu0 %v900
    %1086 = vmatpush1.bf16.msra.mxu0 %v899
    %1087 = vmatprep.subr.bf16.mxu0 %v903
    %1088 = vmatpush1.bf16.msra.mxu0 %v902
    %1089 = vmatprep.subr.bf16.mxu0 %v906
    %1090 = vmatpush1.bf16.msra.mxu0 %v905
    %1091 = vmatprep.subr.bf16.mxu0 %v909
    %1092 = vmatpush1.bf16.msra.mxu0 %v908
    %1093 = vmatprep.subr.bf16.mxu0 %v912
    %1094 = vmatpush1.bf16.msra.mxu0 %v911
    %1095 = vmatprep.subr.bf16.mxu0 %v915
    %1096 = vmatpush1.bf16.msra.mxu0 %v914
    %1097 = vmatprep.subr.bf16.mxu0 %v918
    %1098 = vmatpush1.bf16.msra.mxu0 %v917
    %1099 = vmatprep.subr.bf16.mxu0 %v921
    %1100 = vmatpush1.bf16.msra.mxu0 %v920
    %1101 = vmatprep.subr.bf16.mxu0 %v924
    %1102 = vmatpush1.bf16.msra.mxu0 %v923
    %1103 = vmatprep.subr.bf16.mxu0 %v927
    %1104 = vmatpush1.bf16.msra.mxu0 %v926
    %1105 = vmatprep.subr.bf16.mxu0 %v930
    %1106 = vmatpush1.bf16.msra.mxu0 %v929
    %1107 = vmatprep.subr.bf16.mxu0 %v933
    %1108 = vmatpush1.bf16.msra.mxu0 %v932
    %1109 = vmatprep.subr.bf16.mxu0 %v936
    %1110 = vmatpush1.bf16.msra.mxu0 %v935
    %1111 = vmatprep.subr.bf16.mxu0 %v939
    %1112 = vmatpush1.bf16.msra.mxu0 %v938
    %1113 = vmatprep.subr.bf16.mxu0 %v942
    %1114 = vmatpush1.bf16.msra.mxu0 %v941
    %1115 = vmatprep.mubr.bf16.mxu0 %v269
    %1116 = vmatmul.mubr.bf16.gmra.mrb[0].mxu0 %v268
    %v1117 = vpop.f32.mrb[0].mxu0
    %v1118 = vadd.f32 %v1075, %v1117
    %v1119 = vpop.f32.mrb[0].mxu0
    %v1120 = vadd.f32 %v1077, %v1119
    %v1121 = vpop.f32.mrb[0].mxu0
    %v1122 = vadd.f32 %v1079, %v1121
    %v1123 = vpop.f32.mrb[0].mxu0
    %v1124 = vadd.f32 %v1081, %v1123
    %1125 = vdwg.mxu0
    %1126 = vmatprep.subr.bf16.mxu0 0
    %1127 = vmatpush1.bf16.msra.mxu0 %v850
    %1128 = vmatprep.subr.bf16.mxu0 0
    %1129 = vmatpush1.bf16.msra.mxu0 %v853
    %1130 = vmatprep.subr.bf16.mxu0 0
    %1131 = vmatpush1.bf16.msra.mxu0 %v856
    %1132 = vmatprep.subr.bf16.mxu0 0
    %1133 = vmatpush1.bf16.msra.mxu0 %v859
    %1134 = vmatprep.subr.bf16.mxu0 0
    %1135 = vmatpush1.bf16.msra.mxu0 %v862
    %1136 = vmatprep.subr.bf16.mxu0 0
    %1137 = vmatpush1.bf16.msra.mxu0 %v865
    %1138 = vmatprep.subr.bf16.mxu0 0
    %1139 = vmatpush1.bf16.msra.mxu0 %v868
    %1140 = vmatprep.subr.bf16.mxu0 0
    %1141 = vmatpush1.bf16.msra.mxu0 %v871
    %1142 = vmatprep.subr.bf16.mxu0 0
    %1143 = vmatpush1.bf16.msra.mxu0 %v874
    %1144 = vmatprep.subr.bf16.mxu0 0
    %1145 = vmatpush1.bf16.msra.mxu0 %v877
    %1146 = vmatprep.subr.bf16.mxu0 0
    %1147 = vmatpush1.bf16.msra.mxu0 %v880
    %1148 = vmatprep.subr.bf16.mxu0 0
    %1149 = vmatpush1.bf16.msra.mxu0 %v883
    %1150 = vmatprep.subr.bf16.mxu0 0
    %1151 = vmatpush1.bf16.msra.mxu0 %v886
    %1152 = vmatprep.subr.bf16.mxu0 0
    %1153 = vmatpush1.bf16.msra.mxu0 %v889
    %1154 = vmatprep.subr.bf16.mxu0 0
    %1155 = vmatpush1.bf16.msra.mxu0 %v892
    %1156 = vmatprep.subr.bf16.mxu0 0
    %1157 = vmatpush1.bf16.msra.mxu0 %v895
    %1158 = vmatprep.mubr.bf16.mxu0 %v267
    %1159 = vmatmul.mubr.bf16.gmra.mrb[0].mxu0 %v266
    %v1160 = vpop.f32.mrb[0].mxu0
    %v1161 = vadd.f32 %v522, %v1160
    %v1162 = vpop.f32.mrb[0].mxu0
    %v1163 = vpop.f32.mrb[0].mxu0
    %v1164 = vadd.f32 %v525, %v1163
    %v1165 = vpop.f32.mrb[0].mxu0
    %1166 = vdwg.mxu0
    %1167 = vmatprep.subr.bf16.mxu0 0
    %1168 = vmatpush1.bf16.msra.mxu0 %v898
    %1169 = vmatprep.subr.bf16.mxu0 0
    %1170 = vmatpush1.bf16.msra.mxu0 %v901
    %1171 = vmatprep.subr.bf16.mxu0 0
    %1172 = vmatpush1.bf16.msra.mxu0 %v904
    %1173 = vmatprep.subr.bf16.mxu0 0
    %1174 = vmatpush1.bf16.msra.mxu0 %v907
    %1175 = vmatprep.subr.bf16.mxu0 0
    %1176 = vmatpush1.bf16.msra.mxu0 %v910
    %1177 = vmatprep.subr.bf16.mxu0 0
    %1178 = vmatpush1.bf16.msra.mxu0 %v913
    %1179 = vmatprep.subr.bf16.mxu0 0
    %1180 = vmatpush1.bf16.msra.mxu0 %v916
    %1181 = vmatprep.subr.bf16.mxu0 0
    %1182 = vmatpush1.bf16.msra.mxu0 %v919
    %1183 = vmatprep.subr.bf16.mxu0 0
    %1184 = vmatpush1.bf16.msra.mxu0 %v922
    %1185 = vmatprep.subr.bf16.mxu0 0
    %1186 = vmatpush1.bf16.msra.mxu0 %v925
    %1187 = vmatprep.subr.bf16.mxu0 0
    %1188 = vmatpush1.bf16.msra.mxu0 %v928
    %1189 = vmatprep.subr.bf16.mxu0 0
    %1190 = vmatpush1.bf16.msra.mxu0 %v931
    %1191 = vmatprep.subr.bf16.mxu0 0
    %1192 = vmatpush1.bf16.msra.mxu0 %v934
    %1193 = vmatprep.subr.bf16.mxu0 0
    %1194 = vmatpush1.bf16.msra.mxu0 %v937
    %1195 = vmatprep.subr.bf16.mxu0 0
    %1196 = vmatpush1.bf16.msra.mxu0 %v940
    %1197 = vmatprep.subr.bf16.mxu0 0
    %1198 = vmatpush1.bf16.msra.mxu0 %v943
    %1199 = vmatprep.mubr.bf16.mxu0 %v269
    %1200 = vmatmul.mubr.bf16.gmra.mrb[0].mxu0 %v268
    %v1201 = vpop.f32.mrb[0].mxu0
    %v1202 = vadd.f32 %v1161, %v1201
    %v1203 = vpop.f32.mrb[0].mxu0
    %v1204 = vpop.f32.mrb[0].mxu0
    %v1205 = vadd.f32 %v1164, %v1204
    %v1206 = vpop.f32.mrb[0].mxu0
    %1207 = vdwg.mxu0
    %v1209 = vlaneseq
    %v1210 = vshrl.u32 %v1209, 7
    %v1211 = vsub.s32 0, %v1210
    %v1212 = vrot.slane %v83, %v1211
    %v1213 = vlaneseq
    %v1214 = vshrl.u32 %v1213, 7
    %v1215 = vsub.s32 1, %v1214
    %v1216 = vrot.slane %v83, %v1215
    %v1217 = vlaneseq
    %v1218 = vshrl.u32 %v1217, 7
    %v1219 = vsub.s32 2, %v1218
    %v1220 = vrot.slane %v83, %v1219
    %v1224 = vadd.f32 %v1118, %v1212
    %v1225 = vadd.f32 %v1120, %v1216
    %v1226 = vadd.f32 %v1202, %v1220
    %v1227 = vadd.f32 %v1122, %v1212
    %v1228 = vadd.f32 %v1124, %v1216
    %v1229 = vadd.f32 %v1205, %v1220
    %v1230 = vmax.f32 %v1224, 0.0
    %v1231 = vmax.f32 %v1225, 0.0
    %v1232 = vmax.f32 %v1226, 0.0
    %v1233 = vmax.f32 %v1227, 0.0
    %v1234 = vmax.f32 %v1228, 0.0
    %v1235 = vmax.f32 %v1229, 0.0
    %v1236 = vpack.c.bf16 %v1233, %v1230
    %v1237 = vpack.c.bf16 %v1234, %v1231
    %v1238 = vpack.c.bf16 %v1235, %v1232
    %v1239 = vld [vmem:[#allocation7] sm:$0xf]
    %v1240 = vld [vmem:[#allocation7 + $0x4] sm:$0xf]
    %v1241 = vld [vmem:[#allocation7 + $0x8] sm:$0xf]
    %v1242 = vld [vmem:[#allocation7 + $0xc] sm:$0xf]
    %v1243 = vld [vmem:[#allocation7 + $0x10] sm:$0xf]
    %v1244 = vld [vmem:[#allocation7 + $0x14] sm:$0xf]
    %v1245 = vld [vmem:[#allocation7 + $0x18] sm:$0xf]
    %v1246 = vld [vmem:[#allocation7 + $0x1c] sm:$0xf]
    %v1247 = vld [vmem:[#allocation7 + $0x20] sm:$0xf]
    %v1248 = vld [vmem:[#allocation7 + $0x24] sm:$0xf]
    %v1249 = vld [vmem:[#allocation7 + $0x28] sm:$0xf]
    %v1250 = vld [vmem:[#allocation7 + $0x2c] sm:$0xf]
    %v1251 = vld [vmem:[#allocation7 + $0x30] sm:$0xf]
    %v1252 = vld [vmem:[#allocation7 + $0x34] sm:$0xf]
    %v1253 = vld [vmem:[#allocation7 + $0x38] sm:$0xf]
    %v1254 = vld [vmem:[#allocation7 + $0x3c] sm:$0xf]
    %v1255 = vld [vmem:[#allocation7 + $0x40] sm:$0xf]
    %v1256 = vld [vmem:[#allocation7 + $0x44] sm:$0xf]
    %v1257 = vld [vmem:[#allocation7 + $0x48] sm:$0xf]
    %v1258 = vld [vmem:[#allocation7 + $0x4c] sm:$0xf]
    %v1259 = vld [vmem:[#allocation7 + $0x50] sm:$0xf]
    %v1260 = vld [vmem:[#allocation7 + $0x54] sm:$0xf]
    %v1261 = vld [vmem:[#allocation7 + $0x58] sm:$0xf]
    %v1262 = vld [vmem:[#allocation7 + $0x5c] sm:$0xf]
    %v1263 = vld [vmem:[#allocation7 + $0x60] sm:$0xf]
    %v1264 = vld [vmem:[#allocation7 + $0x64] sm:$0xf]
    %v1265 = vld [vmem:[#allocation7 + $0x68] sm:$0xf]
    %v1266 = vld [vmem:[#allocation7 + $0x6c] sm:$0xf]
    %v1267 = vld [vmem:[#allocation7 + $0x70] sm:$0xf]
    %v1268 = vld [vmem:[#allocation7 + $0x74] sm:$0xf]
    %v1269 = vld [vmem:[#allocation7 + $0x78] sm:$0xf]
    %v1270 = vld [vmem:[#allocation7 + $0x7c] sm:$0xf]
    %v1271 = vld [vmem:[#allocation7 + $0x80] sm:$0xf]
    %v1272 = vld [vmem:[#allocation7 + $0x84] sm:$0xf]
    %v1273 = vld [vmem:[#allocation7 + $0x88] sm:$0xf]
    %v1274 = vld [vmem:[#allocation7 + $0x8c] sm:$0xf]
    %v1275 = vld [vmem:[#allocation7 + $0x90] sm:$0xf]
    %v1276 = vld [vmem:[#allocation7 + $0x94] sm:$0xf]
    %v1277 = vld [vmem:[#allocation7 + $0x98] sm:$0xf]
    %v1278 = vld [vmem:[#allocation7 + $0x9c] sm:$0xf]
    %v1279 = vld [vmem:[#allocation7 + $0xa0] sm:$0xf]
    %v1280 = vld [vmem:[#allocation7 + $0xa4] sm:$0xf]
    %v1281 = vld [vmem:[#allocation7 + $0xa8] sm:$0xf]
    %v1282 = vld [vmem:[#allocation7 + $0xac] sm:$0xf]
    %v1283 = vld [vmem:[#allocation7 + $0xb0] sm:$0xf]
    %v1284 = vld [vmem:[#allocation7 + $0xb4] sm:$0xf]
    %v1285 = vld [vmem:[#allocation7 + $0xb8] sm:$0xf]
    %v1286 = vld [vmem:[#allocation7 + $0xbc] sm:$0xf]
    %v1287 = vlaneseq
    %v1288 = vshrl.u32 %v1287, 7
    %v1289 = vsub.s32 0, %v1288
    %v1290 = vrot.slane %v84, %v1289
    %v1339 = vunpack.c.l.b16 %v1239
    %v1340 = vunpack.c.l.b16 %v1240
    %v1341 = vunpack.c.l.b16 %v1241
    %v1342 = vunpack.c.l.b16 %v1242
    %v1343 = vunpack.c.l.b16 %v1243
    %v1344 = vunpack.c.l.b16 %v1244
    %v1345 = vunpack.c.l.b16 %v1245
    %v1346 = vunpack.c.l.b16 %v1246
    %v1347 = vunpack.c.l.b16 %v1247
    %v1348 = vunpack.c.l.b16 %v1248
    %v1349 = vunpack.c.l.b16 %v1249
    %v1350 = vunpack.c.l.b16 %v1250
    %v1351 = vunpack.c.l.b16 %v1251
    %v1352 = vunpack.c.l.b16 %v1252
    %v1353 = vunpack.c.l.b16 %v1253
    %v1354 = vunpack.c.l.b16 %v1254
    %v1355 = vunpack.c.l.b16 %v1255
    %v1356 = vunpack.c.l.b16 %v1256
    %v1357 = vunpack.c.l.b16 %v1257
    %v1358 = vunpack.c.l.b16 %v1258
    %v1359 = vunpack.c.l.b16 %v1259
    %v1360 = vunpack.c.l.b16 %v1260
    %v1361 = vunpack.c.l.b16 %v1261
    %v1362 = vunpack.c.l.b16 %v1262
    %v1363 = vunpack.c.l.b16 %v1263
    %v1364 = vunpack.c.l.b16 %v1264
    %v1365 = vunpack.c.l.b16 %v1265
    %v1366 = vunpack.c.l.b16 %v1266
    %v1367 = vunpack.c.l.b16 %v1267
    %v1368 = vunpack.c.l.b16 %v1268
    %v1369 = vunpack.c.l.b16 %v1269
    %v1370 = vunpack.c.l.b16 %v1270
    %v1371 = vunpack.c.l.b16 %v1271
    %v1372 = vunpack.c.l.b16 %v1272
    %v1373 = vunpack.c.l.b16 %v1273
    %v1374 = vunpack.c.l.b16 %v1274
    %v1375 = vunpack.c.l.b16 %v1275
    %v1376 = vunpack.c.l.b16 %v1276
    %v1377 = vunpack.c.l.b16 %v1277
    %v1378 = vunpack.c.l.b16 %v1278
    %v1379 = vunpack.c.l.b16 %v1279
    %v1380 = vunpack.c.l.b16 %v1280
    %v1381 = vunpack.c.l.b16 %v1281
    %v1382 = vunpack.c.l.b16 %v1282
    %v1383 = vunpack.c.l.b16 %v1283
    %v1384 = vunpack.c.l.b16 %v1284
    %v1385 = vunpack.c.l.b16 %v1285
    %v1386 = vunpack.c.l.b16 %v1286
    %v1387 = vpack.c.b16 %v1340, %v1339
    %v1388 = vpack.c.b16 %v1342, %v1341
    %v1389 = vpack.c.b16 %v1344, %v1343
    %v1390 = vpack.c.b16 %v1346, %v1345
    %v1391 = vpack.c.b16 %v1348, %v1347
    %v1392 = vpack.c.b16 %v1350, %v1349
    %v1393 = vpack.c.b16 %v1352, %v1351
    %v1394 = vpack.c.b16 %v1354, %v1353
    %v1395 = vpack.c.b16 %v1356, %v1355
    %v1396 = vpack.c.b16 %v1358, %v1357
    %v1397 = vpack.c.b16 %v1360, %v1359
    %v1398 = vpack.c.b16 %v1362, %v1361
    %v1399 = vpack.c.b16 %v1364, %v1363
    %v1400 = vpack.c.b16 %v1366, %v1365
    %v1401 = vpack.c.b16 %v1368, %v1367
    %v1402 = vpack.c.b16 %v1370, %v1369
    %v1403 = vpack.c.b16 %v1372, %v1371
    %v1404 = vpack.c.b16 %v1374, %v1373
    %v1405 = vpack.c.b16 %v1376, %v1375
    %v1406 = vpack.c.b16 %v1378, %v1377
    %v1407 = vpack.c.b16 %v1380, %v1379
    %v1408 = vpack.c.b16 %v1382, %v1381
    %v1409 = vpack.c.b16 %v1384, %v1383
    %v1410 = vpack.c.b16 %v1386, %v1385
    %1435 = vmatprep.subr.bf16.mxu0 0
    %1436 = vmatpush1.bf16.msra.mxu0 %v1387
    %1437 = vmatprep.subr.bf16.mxu0 0
    %1438 = vmatpush1.bf16.msra.mxu0 %v1388
    %1439 = vmatprep.subr.bf16.mxu0 0
    %1440 = vmatpush1.bf16.msra.mxu0 %v1389
    %1441 = vmatprep.subr.bf16.mxu0 0
    %1442 = vmatpush1.bf16.msra.mxu0 %v1390
    %1443 = vmatprep.subr.bf16.mxu0 0
    %1444 = vmatpush1.bf16.msra.mxu0 %v1391
    %1445 = vmatprep.subr.bf16.mxu0 0
    %1446 = vmatpush1.bf16.msra.mxu0 %v1392
    %1447 = vmatprep.subr.bf16.mxu0 0
    %1448 = vmatpush1.bf16.msra.mxu0 %v1393
    %1449 = vmatprep.subr.bf16.mxu0 0
    %1450 = vmatpush1.bf16.msra.mxu0 %v1394
    %1451 = vmatprep.subr.bf16.mxu0 0
    %1452 = vmatpush1.bf16.msra.mxu0 %v1395
    %1453 = vmatprep.subr.bf16.mxu0 0
    %1454 = vmatpush1.bf16.msra.mxu0 %v1396
    %1455 = vmatprep.subr.bf16.mxu0 0
    %1456 = vmatpush1.bf16.msra.mxu0 %v1397
    %1457 = vmatprep.subr.bf16.mxu0 0
    %1458 = vmatpush1.bf16.msra.mxu0 %v1398
    %1459 = vmatprep.subr.bf16.mxu0 0
    %1460 = vmatpush1.bf16.msra.mxu0 %v1399
    %1461 = vmatprep.subr.bf16.mxu0 0
    %1462 = vmatpush1.bf16.msra.mxu0 %v1400
    %1463 = vmatprep.subr.bf16.mxu0 0
    %1464 = vmatpush1.bf16.msra.mxu0 %v1401
    %1465 = vmatprep.subr.bf16.mxu0 0
    %1466 = vmatpush1.bf16.msra.mxu0 %v1402
    %1467 = vmatprep.mubr.bf16.mxu0 %v1237
    %1468 = vmatmul.mubr.bf16.gmra.mrb[0].mxu0 %v1236
    %v1469 = vpop.f32.mrb[0].mxu0
    %v1470 = vadd.f32 %v1290, %v1469
    %v1471 = vpop.f32.mrb[0].mxu0
    %v1472 = vpop.f32.mrb[0].mxu0
    %v1473 = vadd.f32 %v1290, %v1472
    %v1474 = vpop.f32.mrb[0].mxu0
    %1475 = vdwg.mxu0
    %1476 = vmatprep.subr.bf16.mxu0 0
    %1477 = vmatpush1.bf16.msra.mxu0 %v1403
    %1478 = vmatprep.subr.bf16.mxu0 0
    %1479 = vmatpush1.bf16.msra.mxu0 %v1404
    %1480 = vmatprep.subr.bf16.mxu0 0
    %1481 = vmatpush1.bf16.msra.mxu0 %v1405
    %1482 = vmatprep.subr.bf16.mxu0 0
    %1483 = vmatpush1.bf16.msra.mxu0 %v1406
    %1484 = vmatprep.subr.bf16.mxu0 0
    %1485 = vmatpush1.bf16.msra.mxu0 %v1407
    %1486 = vmatprep.subr.bf16.mxu0 0
    %1487 = vmatpush1.bf16.msra.mxu0 %v1408
    %1488 = vmatprep.subr.bf16.mxu0 0
    %1489 = vmatpush1.bf16.msra.mxu0 %v1409
    %1490 = vmatprep.subr.bf16.mxu0 0
    %1491 = vmatpush1.bf16.msra.mxu0 %v1410
    %1492 = vmatprep.subr.bf16.mxu0 0
    %1493 = vmatpush1.bf16.msra.mxu0 0
    %1494 = vmatprep.subr.bf16.mxu0 0
    %1495 = vmatpush1.bf16.msra.mxu0 0
    %1496 = vmatprep.subr.bf16.mxu0 0
    %1497 = vmatpush1.bf16.msra.mxu0 0
    %1498 = vmatprep.subr.bf16.mxu0 0
    %1499 = vmatpush1.bf16.msra.mxu0 0
    %1500 = vmatprep.subr.bf16.mxu0 0
    %1501 = vmatpush1.bf16.msra.mxu0 0
    %1502 = vmatprep.subr.bf16.mxu0 0
    %1503 = vmatpush1.bf16.msra.mxu0 0
    %1504 = vmatprep.subr.bf16.mxu0 0
    %1505 = vmatpush1.bf16.msra.mxu0 0
    %1506 = vmatprep.subr.bf16.mxu0 0
    %1507 = vmatpush1.bf16.msra.mxu0 0
    %1508 = vmatprep.mubr.bf16.mxu0 0
    %1509 = vmatmul.mubr.bf16.gmra.mrb[0].mxu0 %v1238
    %v1510 = vpop.f32.mrb[0].mxu0
    %v1511 = vadd.f32 %v1470, %v1510
    %v1512 = vpop.f32.mrb[0].mxu0
    %v1513 = vpop.f32.mrb[0].mxu0
    %v1514 = vadd.f32 %v1473, %v1513
    %v1515 = vpop.f32.mrb[0].mxu0
    %1516 = vdwg.mxu0
    %1517 = vst [vmem:[%s6] sm:$0xff] %v1511
    %1518 = vst [vmem:[%s6 + $0x8] sm:$0xff] %v1514
    // Predicated region
    $region42: #{d4pg_critic_forward.1} parent=1 // pred_check
      _
    $region43: #{d4pg_critic_forward.1} parent=1 // pred_check_branch
      %1520 = sbr.rel (0) target = $region45
    $region44: #{d4pg_critic_forward.1} parent=1 // pred_region
      _
    $region45: #{d4pg_critic_forward.1} parent=1 // pred_fallthru
      _
    // Predicated region
    $region46: #{d4pg_critic_forward.1} parent=1 // pred_check
      _
    $region47: #{d4pg_critic_forward.1} parent=1 // pred_check_branch
      %1522 = sbr.rel (0) target = $region49
    $region48: #{d4pg_critic_forward.1} parent=1 // pred_region
      _
    $region49: #{d4pg_critic_forward.1} parent=1 // pred_fallthru
      _
    %1523 = vsyncpa [#allocation3], 1
    %1524 = vsyncpa [#allocation5], 1
    %1525 = vsyncpa [#allocation8], 1

</llo_original>
